<compile_context>
chip_gen: v7x
topology: tpu7x:2x2x1
jax: 0.10.0
libtpu: 0.0.40
codegen_flags: <defaults>
</compile_context>

<pallas_src>
import jax
import jax.numpy as jnp
from jax.experimental import pallas as pl
from jax.experimental.pallas import tpu as pltpu

_LANE = 128                 # TPU vreg lane width
_SUBLANE = 8                # TPU vreg sublane count
_DEFAULT_BLOCK_ROWS = 4096  # (4096, 128) f32 = 2 MiB per input per block


# ----------------------------------------------------------------------------
# lgamma(x + 1) via the g=5, n=6 Lanczos series (Numerical Recipes set),
# written directly for Gamma(x+1) so all polynomials are in x = y_pred:
#
#   Gamma(x+1) = sqrt(2*pi) * (x+5.5)^(x+0.5) * exp(-(x+5.5)) * A(x)
#   A(x)       = c0 + sum_{j=1..6} c_j / (x + j)  =  N(x) / D(x)
#   D(x)       = prod_{j=1..6} (x + j)                      (degree 6)
#   N'(x)      = sqrt(2*pi) * N(x)                           (degree 6)
#
#   lgamma(x+1) = (x+0.5)*log(x+5.5) - (x+5.5) + log(N'(x)) - log(D(x))
#
# Cost per element: 2 degree-6 Horners (24 VPU mul/adds) + 3 logs (EUP),
# no divide.  Accuracy of the series itself ~1e-10; f32 evaluation ~1e-6.
# ----------------------------------------------------------------------------
_G5_SER0 = 1.000000000190015
_G5_COF = (76.18009172947146, -86.50532032941677, 24.01409824083091,
           -1.231739572450155, 0.1208650973866179e-2, -0.5395239384953e-5)
_SQRT_2PI = 2.5066282746310005


def _poly_mul(a, b):
    out = [0.0] * (len(a) + len(b) - 1)
    for i, ai in enumerate(a):
        for j, bj in enumerate(b):
            out[i + j] += ai * bj
    return out


def _build_g5_rational():
    """Expand the Lanczos partial-fraction sum into N'(x)/D(x) (f64, once)."""
    den = [1.0]
    for j in range(1, 7):                   # D(x) = prod_{j=1..6} (x + j)
        den = _poly_mul(den, [float(j), 1.0])
    num = [_G5_SER0 * c for c in den]       # c0 * D(x)
    for k in range(1, 7):                   # + c_k * D(x)/(x + k)
        p = [1.0]
        for j in range(1, 7):
            if j != k:
                p = _poly_mul(p, [float(j), 1.0])
        for i, pi in enumerate(p):
            num[i] += _G5_COF[k - 1] * pi
    num = [_SQRT_2PI * c for c in num]      # fold sqrt(2*pi) into N
    return tuple(num), tuple(den)


_G5_NUM, _G5_DEN = _build_g5_rational()


def _horner(coeffs_ascending, x):
    acc = jnp.full_like(x, float(coeffs_ascending[-1]))
    for c in coeffs_ascending[-2::-1]:
        acc = acc * x + jnp.float32(c)
    return acc


def _lgamma_yp_plus_1(yp):
    """lgamma(yp + 1) for yp >= 0, polynomials evaluated directly in yp."""
    t = yp + jnp.float32(5.5)
    num = _horner(_G5_NUM, yp)
    den = _horner(_G5_DEN, yp)
    return ((yp + jnp.float32(0.5)) * jnp.log(t)
            - t
            + jnp.log(num)
            - jnp.log(den))                 # no divide: both logs go to the EUP


# ----------------------------------------------------------------------------
# Kernel: streams (block_rows, 128) tiles, accumulates per-vreg partial sums
# (pure VPU adds) into a resident (8, 128) f32 output block.  No masking.
# ----------------------------------------------------------------------------
def _poisson_nll_kernel(yp_ref, yt_ref, acc_ref):
    @pl.when(pl.program_id(0) == 0)
    def _init():
        acc_ref[...] = jnp.zeros_like(acc_ref)

    yp = yp_ref[...].astype(jnp.float32)
    yt = yt_ref[...].astype(jnp.float32)

    p_l = (-yt
           + yp * jnp.log(yt + jnp.float32(1e-6))
           - _lgamma_yp_plus_1(yp))

    # Group whole (8, 128) vreg tiles and add them into the resident block.
    acc_ref[...] += jnp.sum(p_l.reshape(-1, _SUBLANE, _LANE), axis=0)


def poisson_likelihood_loss(y_pred, y_true, *, block_rows=_DEFAULT_BLOCK_ROWS):
    """Pallas TPU implementation of PoissonLikelihood_loss.forward."""
    assert y_pred.shape == y_true.shape
    total = 1
    for d in y_pred.shape:
        total *= int(d)
    if total == 0:
        return jnp.float32(float("nan"))    # torch.mean of empty -> nan

    yp = y_pred.reshape(-1)
    yt = y_true.reshape(-1)

    # Block-aligned prefix handled by the kernel; ragged tail in plain JAX.
    rows = total // _LANE
    rows8 = (rows // _SUBLANE) * _SUBLANE   # rows usable in (8, 128) tiles

    main_elems = 0
    main_sum = jnp.float32(0.0)
    if rows8 >= _SUBLANE:
        steps = pl.cdiv(rows8, block_rows)
        blk = ((rows8 // steps) // _SUBLANE) * _SUBLANE   # multiple of 8
        main_rows = steps * blk                            # <= rows8, exact tiling
        main_elems = main_rows * _LANE

        yp_main = yp[:main_elems].reshape(main_rows, _LANE)
        yt_main = yt[:main_elems].reshape(main_rows, _LANE)

        idx = lambda s: (s, 0)
        partial_sums = pl.pallas_call(
            _poisson_nll_kernel,
            out_shape=jax.ShapeDtypeStruct((_SUBLANE, _LANE), jnp.float32),
            grid_spec=pltpu.PrefetchScalarGridSpec(
                num_scalar_prefetch=0,
                grid=(steps,),
                in_specs=[
                    pl.BlockSpec((blk, _LANE), idx),
                    pl.BlockSpec((blk, _LANE), idx),
                ],
                out_specs=pl.BlockSpec((_SUBLANE, _LANE), lambda s: (0, 0)),
            ),
            compiler_params=pltpu.CompilerParams(
                dimension_semantics=("arbitrary",),
                vmem_limit_bytes=48 * 1024 * 1024,
            ),
        )(yp_main, yt_main)
        main_sum = jnp.sum(partial_sums)

    # Ragged tail (< one block + < 1152 elements): tiny plain-JAX expression.
    tail_sum = jnp.float32(0.0)
    if main_elems < total:
        yp_t = yp[main_elems:].astype(jnp.float32)
        yt_t = yt[main_elems:].astype(jnp.float32)
        p_l_t = (-yt_t
                 + yp_t * jnp.log(yt_t + jnp.float32(1e-6))
                 - jax.lax.lgamma(yp_t + jnp.float32(1.0)))
        tail_sum = jnp.sum(p_l_t)

    return -(main_sum + tail_sum) / jnp.float32(total)


# ----------------------------------------------------------------------------
# Pure-JAX reference (uses lax.lgamma) for a correctness check.
# ----------------------------------------------------------------------------
def _reference(y_pred, y_true):
    eps = 1e-6
    b = y_pred.shape[0]
    yp = y_pred.reshape(b, -1).astype(jnp.float32)
    yt = y_true.reshape(b, -1).astype(jnp.float32)
    p_l = -yt + yp * jnp.log(yt + eps) - jax.lax.lgamma(yp + 1.0)
    return -jnp.mean(p_l)


if __name__ == "__main__":
    key = jax.random.PRNGKey(0)
    k1, k2 = jax.random.split(key)

    # Small NCHW-like inputs (non-negative, as expected for Poisson rates/counts).
    B, C, H, W = 2, 4, 16, 16
    y_pred = jax.random.uniform(k1, (B, C, H, W), jnp.float32, 0.0, 5.0)
    y_true = jax.random.uniform(k2, (B, C, H, W), jnp.float32, 0.0, 5.0)

    loss = poisson_likelihood_loss(y_pred, y_true)
    loss = jax.block_until_ready(loss)

    ref = _reference(y_pred, y_true)
    assert jnp.allclose(loss, ref, rtol=1e-4, atol=1e-4), (loss, ref)

    print("KERNEL_OK")
</pallas_src>

<mosaic_0001>
module attributes {stable_mosaic.version = 11 : i64} {
  func.func @_poisson_nll_kernel(%arg0: i32, %arg1: memref<16x128xf32, #tpu.memory_space<vmem>>, %arg2: memref<16x128xf32, #tpu.memory_space<vmem>>, %arg3: memref<8x128xf32, #tpu.memory_space<vmem>>) attributes {dimension_semantics = [#tpu.dimension_semantics<arbitrary>], iteration_bounds = array<i64: 1>, scalar_prefetch = 0 : i64, scratch_operands = 0 : i64, tpu.core_type = #tpu.core_type<tc>, window_params = [{transform_indices = @transform_0, window_bounds = array<i64: 16, 128>}, {transform_indices = @transform_1, window_bounds = array<i64: 16, 128>}, {pipeline_mode = #tpu.pipeline_mode<synchronous>, transform_indices = @transform_2, window_bounds = array<i64: 8, 128>}]} {
    %c0_i32 = arith.constant 0 : i32
    %0 = arith.cmpi eq, %arg0, %c0_i32 : i32
    %1 = arith.extui %0 : i1 to i32
    %c0_i32_0 = arith.constant 0 : i32
    %2 = arith.cmpi ne, %1, %c0_i32_0 : i32
    scf.if %2 {
      %cst_26 = arith.constant 0.000000e+00 : f32
      %67 = vector.broadcast %cst_26 : f32 to vector<8x128xf32>
      %c0_27 = arith.constant 0 : index
      %c0_28 = arith.constant 0 : index
      %68 = vector.load %arg3[%c0_27, %c0_28] : memref<8x128xf32, #tpu.memory_space<vmem>>, vector<8x128xf32>
      tpu.vector_store %arg3[%c0_27, %c0_28], %67 {strides = array<i32>} : memref<8x128xf32, #tpu.memory_space<vmem>>, vector<8x128xf32>,
    } else {
    }
    %c0 = arith.constant 0 : index
    %c0_1 = arith.constant 0 : index
    %3 = vector.load %arg1[%c0, %c0_1] : memref<16x128xf32, #tpu.memory_space<vmem>>, vector<16x128xf32>
    %c0_2 = arith.constant 0 : index
    %c0_3 = arith.constant 0 : index
    %4 = vector.load %arg2[%c0_2, %c0_3] : memref<16x128xf32, #tpu.memory_space<vmem>>, vector<16x128xf32>
    %cst = arith.constant 0.000000e+00 : f32
    %5 = vector.broadcast %cst : f32 to vector<16x128xf32>
    %6 = arith.subf %5, %4 : vector<16x128xf32>
    %cst_4 = arith.constant 9.99999997E-7 : f32
    %7 = vector.broadcast %cst_4 : f32 to vector<16x128xf32>
    %8 = arith.addf %4, %7 : vector<16x128xf32>
    %9 = math.log %8 : vector<16x128xf32>
    %10 = arith.mulf %3, %9 : vector<16x128xf32>
    %11 = arith.addf %6, %10 : vector<16x128xf32>
    %cst_5 = arith.constant 5.500000e+00 : f32
    %12 = vector.broadcast %cst_5 : f32 to vector<16x128xf32>
    %13 = arith.addf %3, %12 : vector<16x128xf32>
    %cst_6 = arith.constant 2.50662827 : f32
    %14 = vector.broadcast %cst_6 : f32 to vector<16x128xf32>
    %15 = arith.mulf %14, %3 : vector<16x128xf32>
    %cst_7 = arith.constant 83.8676071 : f32
    %16 = vector.broadcast %cst_7 : f32 to vector<16x128xf32>
    %17 = arith.addf %15, %16 : vector<16x128xf32>
    %18 = arith.mulf %17, %3 : vector<16x128xf32>
    %cst_8 = arith.constant 1168.92651 : f32
    %19 = vector.broadcast %cst_8 : f32 to vector<16x128xf32>
    %20 = arith.addf %18, %19 : vector<16x128xf32>
    %21 = arith.mulf %20, %3 : vector<16x128xf32>
    %cst_9 = arith.constant 8687.24511 : f32
    %22 = vector.broadcast %cst_9 : f32 to vector<16x128xf32>
    %23 = arith.addf %21, %22 : vector<16x128xf32>
    %24 = arith.mulf %23, %3 : vector<16x128xf32>
    %cst_10 = arith.constant 36308.2969 : f32
    %25 = vector.broadcast %cst_10 : f32 to vector<16x128xf32>
    %26 = arith.addf %24, %25 : vector<16x128xf32>
    %27 = arith.mulf %26, %3 : vector<16x128xf32>
    %cst_11 = arith.constant 80916.625 : f32
    %28 = vector.broadcast %cst_11 : f32 to vector<16x128xf32>
    %29 = arith.addf %27, %28 : vector<16x128xf32>
    %30 = arith.mulf %29, %3 : vector<16x128xf32>
    %cst_12 = arith.constant 75122.6328 : f32
    %31 = vector.broadcast %cst_12 : f32 to vector<16x128xf32>
    %32 = arith.addf %30, %31 : vector<16x128xf32>
    %cst_13 = arith.constant 1.000000e+00 : f32
    %33 = vector.broadcast %cst_13 : f32 to vector<16x128xf32>
    %34 = arith.mulf %33, %3 : vector<16x128xf32>
    %cst_14 = arith.constant 2.100000e+01 : f32
    %35 = vector.broadcast %cst_14 : f32 to vector<16x128xf32>
    %36 = arith.addf %34, %35 : vector<16x128xf32>
    %37 = arith.mulf %36, %3 : vector<16x128xf32>
    %cst_15 = arith.constant 1.750000e+02 : f32
    %38 = vector.broadcast %cst_15 : f32 to vector<16x128xf32>
    %39 = arith.addf %37, %38 : vector<16x128xf32>
    %40 = arith.mulf %39, %3 : vector<16x128xf32>
    %cst_16 = arith.constant 7.350000e+02 : f32
    %41 = vector.broadcast %cst_16 : f32 to vector<16x128xf32>
    %42 = arith.addf %40, %41 : vector<16x128xf32>
    %43 = arith.mulf %42, %3 : vector<16x128xf32>
    %cst_17 = arith.constant 1.624000e+03 : f32
    %44 = vector.broadcast %cst_17 : f32 to vector<16x128xf32>
    %45 = arith.addf %43, %44 : vector<16x128xf32>
    %46 = arith.mulf %45, %3 : vector<16x128xf32>
    %cst_18 = arith.constant 1.764000e+03 : f32
    %47 = vector.broadcast %cst_18 : f32 to vector<16x128xf32>
    %48 = arith.addf %46, %47 : vector<16x128xf32>
    %49 = arith.mulf %48, %3 : vector<16x128xf32>
    %cst_19 = arith.constant 7.200000e+02 : f32
    %50 = vector.broadcast %cst_19 : f32 to vector<16x128xf32>
    %51 = arith.addf %49, %50 : vector<16x128xf32>
    %cst_20 = arith.constant 5.000000e-01 : f32
    %52 = vector.broadcast %cst_20 : f32 to vector<16x128xf32>
    %53 = arith.addf %3, %52 : vector<16x128xf32>
    %54 = math.log %13 : vector<16x128xf32>
    %55 = arith.mulf %53, %54 : vector<16x128xf32>
    %56 = arith.subf %55, %13 : vector<16x128xf32>
    %57 = math.log %32 : vector<16x128xf32>
    %58 = arith.addf %56, %57 : vector<16x128xf32>
    %59 = math.log %51 : vector<16x128xf32>
    %60 = arith.subf %58, %59 : vector<16x128xf32>
    %61 = arith.subf %11, %60 : vector<16x128xf32>
    %c0_21 = arith.constant 0 : index
    %c0_22 = arith.constant 0 : index
    %62 = vector.load %arg3[%c0_21, %c0_22] : memref<8x128xf32, #tpu.memory_space<vmem>>, vector<8x128xf32>
    %63 = vector.shape_cast %61 : vector<16x128xf32> to vector<2x8x128xf32>
    %cst_23 = arith.constant dense<0.000000e+00> : vector<8x128xf32>
    %64 = vector.multi_reduction <add>, %63, %cst_23 [0] : vector<2x8x128xf32> to vector<8x128xf32>
    %65 = arith.addf %62, %64 : vector<8x128xf32>
    %c0_24 = arith.constant 0 : index
    %c0_25 = arith.constant 0 : index
    %66 = vector.load %arg3[%c0_24, %c0_25] : memref<8x128xf32, #tpu.memory_space<vmem>>, vector<8x128xf32>
    tpu.vector_store %arg3[%c0_24, %c0_25], %65 {strides = array<i32>} : memref<8x128xf32, #tpu.memory_space<vmem>>, vector<8x128xf32>,
    return
  }
  func.func @transform_0(%arg0: i32) -> (i32, i32) {
    %c0_i32 = arith.constant 0 : i32
    %c0_i32_0 = arith.constant 0 : i32
    return %arg0, %c0_i32 : i32, i32
  }
  func.func @transform_1(%arg0: i32) -> (i32, i32) {
    %c0_i32 = arith.constant 0 : i32
    %c0_i32_0 = arith.constant 0 : i32
    return %arg0, %c0_i32 : i32, i32
  }
  func.func @transform_2(%arg0: i32) -> (i32, i32) {
    %c0_i32 = arith.constant 0 : i32
    %c0_i32_0 = arith.constant 0 : i32
    %c0_i32_1 = arith.constant 0 : i32
    return %c0_i32, %c0_i32_0 : i32, i32
  }
}

</mosaic_0001>

<llo_original>
// kernel: tpu_custom_call.1
$region0: #{tpu_custom_call.1}
  #allocation0 [shape = 'u32[]', space=smem, size = 0x4, offset = 0x4, fixed_abs, tag = 'smem constant byte address 0x4 - core index']
  #allocation1 [shape = 'u32[144,128]{1,0:T(1,128)}', space=vmem, size = 0x12000, scoped, tag = 'internal scratch']
  %s0 = inlined_call_operand.hbm [shape: f32[16,128], index: 0, kind: input, shape index: {}]
  %s1 = inlined_call_operand.hbm [shape: f32[16,128], index: 1, kind: input, shape index: {}]
  %s2 = inlined_call_operand.hbm [shape: f32[8,128], index: 2, kind: output, shape index: {}]
  %s3 = sld [smem:[#allocation0]]
  $region30: #{tpu_custom_call.1} parent=0
    _
  %s5 = ssub.s32 1, %s3
  %s6 = scalar_select 0, %s5, %s3
  $region1: #{tpu_custom_call.1} parent=0
    #allocation2 [shape = 'u8[8192]{0}', space=vmem, size = 0x2000, scoped, tag = 'input window, operand 0, single buffered']
    #allocation3 [shape = 's32[1]{0}', space=sflag, size = 0x4, scoped, tag = 'scoped memory for tpu_custom_call.1']
    #allocation4 [shape = 's32[1]{0}', space=sflag, size = 0x4, scoped, tag = 'scoped memory for tpu_custom_call.1']
    #allocation5 [shape = 'u8[8192]{0}', space=vmem, size = 0x2000, scoped, tag = 'input window, operand 1, single buffered']
    #allocation6 [shape = 's32[1]{0}', space=sflag, size = 0x4, scoped, tag = 'scoped memory for tpu_custom_call.1']
    #allocation7 [shape = 'u8[4096]{0}', space=vmem, size = 0x1000, scoped, tag = 'output window, operand 0, single buffered']
    %7 = vsyncpa [#allocation3], 0
    %8 = vsyncpa [#allocation6], 0
    %9 = vsyncpa [#allocation4], 0
    // Predicated region
    $region2: #{tpu_custom_call.1} parent=1 // pred_check
      _
    $region3: #{tpu_custom_call.1} parent=1 // pred_check_branch
      %11 = sbr.rel (0) target = $region5
    $region4: #{tpu_custom_call.1} parent=1 // pred_region
      %s13 = ssub.s32 256, 256
      %14 = vsyncadd [#allocation3], %s13
      %s15 = sshll.u32 [#allocation2], 4
      %s16 = int_to_ptr.vmem [resolvable:$true] %s15
      %21 = dma.hbm_to_vmem [thread:$0]  %s0, 256, %s16, [#allocation3], 128, 128, 8
    $region5: #{tpu_custom_call.1} parent=1 // pred_fallthru
      _
    // Predicated region
    $region6: #{tpu_custom_call.1} parent=1 // pred_check
      _
    $region7: #{tpu_custom_call.1} parent=1 // pred_check_branch
      %23 = sbr.rel (0) target = $region9
    $region8: #{tpu_custom_call.1} parent=1 // pred_region
      %s25 = ssub.s32 256, 256
      %26 = vsyncadd [#allocation6], %s25
      %s27 = sshll.u32 [#allocation5], 4
      %s28 = int_to_ptr.vmem [resolvable:$true] %s27
      %33 = dma.hbm_to_vmem [thread:$0]  %s1, 256, %s28, [#allocation6], 128, 128, 8
    $region9: #{tpu_custom_call.1} parent=1 // pred_fallthru
      _
    // Predicated region
    $region10: #{tpu_custom_call.1} parent=1 // pred_check
      _
    $region11: #{tpu_custom_call.1} parent=1 // pred_check_branch
      %35 = sbr.rel (0) target = $region13
    $region12: #{tpu_custom_call.1} parent=1 // pred_region
      %36 = dma.done [#allocation3], 256
    $region13: #{tpu_custom_call.1} parent=1 // pred_fallthru
      _
    // Predicated region
    $region14: #{tpu_custom_call.1} parent=1 // pred_check
      _
    $region15: #{tpu_custom_call.1} parent=1 // pred_check_branch
      %38 = sbr.rel (0) target = $region17
    $region16: #{tpu_custom_call.1} parent=1 // pred_region
      %39 = dma.done [#allocation6], 256
    $region17: #{tpu_custom_call.1} parent=1 // pred_fallthru
      _
    %p40 = scmp.eq.s32.totalorder 0, 0
    // Predicated region
    $region18: #{tpu_custom_call.1} parent=1 // pred_check
      %p41 = pneg %p40
    $region19: #{tpu_custom_call.1} parent=1 // pred_check_branch
      %43 = sbr.rel (%p41) target = $region21
    $region20: #{tpu_custom_call.1} parent=1 // pred_region
      %44 = vst [vmem:[#allocation7] sm:$0xff] 0.0
    $region21: #{tpu_custom_call.1} parent=1 // pred_fallthru
      _
    %v45 = vld [vmem:[#allocation2] sm:$0xff]
    %v46 = vld [vmem:[#allocation2 + $0x8] sm:$0xff]
    %v47 = vld [vmem:[#allocation5] sm:$0xff]
    %v48 = vld [vmem:[#allocation5 + $0x8] sm:$0xff]
    %v49 = vsub.f32 0.0, %v47
    %v50 = vsub.f32 0.0, %v48
    %v51 = vadd.f32 %v47, 1e-06
    %v52 = vadd.f32 %v48, 1e-06
    %v53 = vlog2.pop %v51
    %v54 = vmul.f32 %v53, 0.6931472
    %v55 = vlog2.pop %v52
    %v56 = vmul.f32 %v55, 0.6931472
    %v57 = vmul.f32 %v45, %v54
    %v58 = vmul.f32 %v46, %v56
    %v59 = vadd.f32 %v49, %v57
    %v60 = vadd.f32 %v50, %v58
    %v61 = vadd.f32 %v45, 5.5
    %v62 = vadd.f32 %v46, 5.5
    %v63 = vmul.f32 %v45, 2.5066283
    %v64 = vmul.f32 %v46, 2.5066283
    %v65 = vadd.f32 %v63, 83.86761
    %v66 = vadd.f32 %v64, 83.86761
    %v67 = vmul.f32 %v65, %v45
    %v68 = vmul.f32 %v66, %v46
    %v69 = vadd.f32 %v67, 1168.9265
    %v70 = vadd.f32 %v68, 1168.9265
    %v71 = vmul.f32 %v69, %v45
    %v72 = vmul.f32 %v70, %v46
    %v73 = vadd.f32 %v71, 8687.245
    %v74 = vadd.f32 %v72, 8687.245
    %v75 = vmul.f32 %v73, %v45
    %v76 = vmul.f32 %v74, %v46
    %v77 = vadd.f32 %v75, 36308.297
    %v78 = vadd.f32 %v76, 36308.297
    %v79 = vmul.f32 %v77, %v45
    %v80 = vmul.f32 %v78, %v46
    %v81 = vadd.f32 %v79, 80916.625
    %v82 = vadd.f32 %v80, 80916.625
    %v83 = vmul.f32 %v81, %v45
    %v84 = vmul.f32 %v82, %v46
    %v85 = vadd.f32 %v83, 75122.63
    %v86 = vadd.f32 %v84, 75122.63
    %v87 = vadd.f32 %v45, 21.0
    %v88 = vadd.f32 %v46, 21.0
    %v89 = vmul.f32 %v87, %v45
    %v90 = vmul.f32 %v88, %v46
    %v91 = vadd.f32 %v89, 175.0
    %v92 = vadd.f32 %v90, 175.0
    %v93 = vmul.f32 %v91, %v45
    %v94 = vmul.f32 %v92, %v46
    %v95 = vadd.f32 %v93, 735.0
    %v96 = vadd.f32 %v94, 735.0
    %v97 = vmul.f32 %v95, %v45
    %v98 = vmul.f32 %v96, %v46
    %v99 = vadd.f32 %v97, 1624.0
    %v100 = vadd.f32 %v98, 1624.0
    %v101 = vmul.f32 %v99, %v45
    %v102 = vmul.f32 %v100, %v46
    %v103 = vadd.f32 %v101, 1764.0
    %v104 = vadd.f32 %v102, 1764.0
    %v105 = vmul.f32 %v103, %v45
    %v106 = vmul.f32 %v104, %v46
    %v107 = vadd.f32 %v105, 720.0
    %v108 = vadd.f32 %v106, 720.0
    %v109 = vadd.f32 %v45, 0.5
    %v110 = vadd.f32 %v46, 0.5
    %v111 = vlog2.pop %v61
    %v112 = vmul.f32 %v111, 0.6931472
    %v113 = vlog2.pop %v62
    %v114 = vmul.f32 %v113, 0.6931472
    %v115 = vmul.f32 %v109, %v112
    %v116 = vmul.f32 %v110, %v114
    %v117 = vsub.f32 %v115, %v61
    %v118 = vsub.f32 %v116, %v62
    %v119 = vlog2.pop %v85
    %v120 = vmul.f32 %v119, 0.6931472
    %v121 = vlog2.pop %v86
    %v122 = vmul.f32 %v121, 0.6931472
    %v123 = vadd.f32 %v117, %v120
    %v124 = vadd.f32 %v118, %v122
    %v125 = vlog2.pop %v107
    %v126 = vmul.f32 %v125, 0.6931472
    %v127 = vlog2.pop %v108
    %v128 = vmul.f32 %v127, 0.6931472
    %v129 = vsub.f32 %v123, %v126
    %v130 = vsub.f32 %v124, %v128
    %v131 = vsub.f32 %v59, %v129
    %v132 = vsub.f32 %v60, %v130
    %v133 = vld [vmem:[#allocation7] sm:$0xff]
    %v134 = vadd.f32 %v131, %v132
    %v135 = vadd.f32 %v133, %v134
    %136 = vst [vmem:[#allocation7] sm:$0xff] %v135
    // Predicated region
    $region22: #{tpu_custom_call.1} parent=1 // pred_check
      _
    $region23: #{tpu_custom_call.1} parent=1 // pred_check_branch
      %138 = sbr.rel (0) target = $region25
    $region24: #{tpu_custom_call.1} parent=1 // pred_region
      %s140 = ssub.s32 128, 128
      %141 = vsyncadd [#allocation4], %s140
      %s143 = sshll.u32 [#allocation7], 4
      %s144 = int_to_ptr.vmem [resolvable:$true] %s143
      %146 = dma.vmem_to_hbm [thread:$0]  %s144, 128, %s2, [#allocation4]
    $region25: #{tpu_custom_call.1} parent=1 // pred_fallthru
      _
    // Predicated region
    $region26: #{tpu_custom_call.1} parent=1 // pred_check
      _
    $region27: #{tpu_custom_call.1} parent=1 // pred_check_branch
      %148 = sbr.rel (0) target = $region29
    $region28: #{tpu_custom_call.1} parent=1 // pred_region
      %149 = dma.done [#allocation4], 128
    $region29: #{tpu_custom_call.1} parent=1 // pred_fallthru
      _
    %150 = vsyncpa [#allocation3], 1
    %151 = vsyncpa [#allocation6], 1
    %152 = vsyncpa [#allocation4], 1

</llo_original>
